<compile_context>
chip_gen: v7x
topology: tpu7x:2x2x1
jax: 0.10.0
libtpu: 0.0.40
codegen_flags: <defaults>
</compile_context>

<pallas_src>
import functools

import jax
import jax.numpy as jnp
from jax.experimental import pallas as pl
from jax.experimental.pallas import tpu as pltpu


def _combined_kernel(p_ref,                       # SMEM scalar parameter
                     x_ref,
                     w0_ref, b0_ref,
                     w1_ref, b1_ref,
                     w2_ref, b2_ref,
                     wf0_ref, bf0_ref,
                     wf1_ref, bf1_ref,
                     out_ref):
    p = p_ref[0]                                  # scalar read once, hoisted
    x = x_ref[...]                                # bf16 batch tile

    # --- representation hook at Linear0 (pre-activation output) ---
    rep = jnp.dot(x, w0_ref[...],
                  preferred_element_type=jnp.float32) + b0_ref[...]
    rep_bf = rep.astype(jnp.bfloat16)

    # --- frozen (multimeter) network on the representation ---
    f0 = jnp.maximum(
        jnp.dot(rep_bf, wf0_ref[...],
                preferred_element_type=jnp.float32) + bf0_ref[...],
        0.0)
    frozen = jnp.dot(f0.astype(jnp.bfloat16), wf1_ref[...],
                     preferred_element_type=jnp.float32) + bf1_ref[...]

    # --- second pass of original network with modification hook at Linear1 ---
    a0 = jnp.maximum(rep, 0.0).astype(jnp.bfloat16)
    h1 = jnp.dot(a0, w1_ref[...],
                 preferred_element_type=jnp.float32) + b1_ref[...]
    mod = h1 + p * frozen      # ModificationHook: out + parameter * frozen_output
    a1 = jnp.maximum(mod, 0.0).astype(jnp.bfloat16)

    # lane-dense (padded to 128 lanes) unmasked store
    out_ref[...] = (jnp.dot(a1, w2_ref[...],
                            preferred_element_type=jnp.float32) + b2_ref[...])


@functools.partial(jax.jit, static_argnames=("tile_b",))
def combined_network(x, params, *, tile_b=128):
    """Run the fused CombinedNetwork forward pass.

    x: (B, D_in) float32.
    params: dict with w0,b0,w1,b1,w2,b2,wf0,bf0,wf1,bf1 (weights (in,out),
            biases (1,out)) and scalar `p` (shape (1,)).
    """
    B, d_in = x.shape
    hidden = params["w0"].shape[1]
    d_out = params["w2"].shape[1]

    tile_b = min(tile_b, B)
    assert B % tile_b == 0, "batch must be divisible by tile_b"

    # --- lane-dense output: pad final layer to a multiple of 128 lanes ---
    lane = 128
    d_out_pad = ((d_out + lane - 1) // lane) * lane
    w2p = jnp.zeros((hidden, d_out_pad), jnp.float32).at[:, :d_out].set(params["w2"])
    b2p = jnp.zeros((1, d_out_pad), jnp.float32).at[:, :d_out].set(params["b2"])

    # --- bf16 MXU operands, f32 accumulation / biases ---
    bf16 = jnp.bfloat16
    x_bf = x.astype(bf16)
    w0 = params["w0"].astype(bf16)
    w1 = params["w1"].astype(bf16)
    w2 = w2p.astype(bf16)
    wf0 = params["wf0"].astype(bf16)
    wf1 = params["wf1"].astype(bf16)
    b0, b1, bf0, bf1 = params["b0"], params["b1"], params["bf0"], params["bf1"]
    b2 = b2p

    full = lambda shape: pl.BlockSpec(shape, lambda i: (0, 0))

    out = pl.pallas_call(
        _combined_kernel,
        out_shape=jax.ShapeDtypeStruct((B, d_out_pad), jnp.float32),
        grid=(B // tile_b,),
        in_specs=[
            pl.BlockSpec(memory_space=pltpu.SMEM),                 # p (scalar)
            pl.BlockSpec((tile_b, d_in), lambda i: (i, 0)),        # x tile
            full(w0.shape),  full(b0.shape),
            full(w1.shape),  full(b1.shape),
            full(w2.shape),  full(b2.shape),
            full(wf0.shape), full(bf0.shape),
            full(wf1.shape), full(bf1.shape),
        ],
        out_specs=pl.BlockSpec((tile_b, d_out_pad), lambda i: (i, 0)),
        compiler_params=pltpu.CompilerParams(
            dimension_semantics=("parallel",),
            vmem_limit_bytes=32 * 1024 * 1024),
    )(params["p"], x_bf,
      w0, b0, w1, b1, w2, b2, wf0, bf0, wf1, bf1)

    return out[:, :d_out]


def _reference(x, p):
    """Pure-JAX f32 reference of the same forward pass."""
    rep = x @ p["w0"] + p["b0"]
    frozen = jnp.maximum(rep @ p["wf0"] + p["bf0"], 0.0) @ p["wf1"] + p["bf1"]
    h1 = jnp.maximum(rep, 0.0) @ p["w1"] + p["b1"]
    mod = h1 + p["p"][0] * frozen
    return jnp.maximum(mod, 0.0) @ p["w2"] + p["b2"]


def _init_params(key, d_in, hidden, d_out):
    ks = jax.random.split(key, 11)
    scale = 0.1
    return {
        "w0":  scale * jax.random.normal(ks[0], (d_in, hidden), jnp.float32),
        "b0":  scale * jax.random.normal(ks[1], (1, hidden), jnp.float32),
        "w1":  scale * jax.random.normal(ks[2], (hidden, hidden), jnp.float32),
        "b1":  scale * jax.random.normal(ks[3], (1, hidden), jnp.float32),
        "w2":  scale * jax.random.normal(ks[4], (hidden, d_out), jnp.float32),
        "b2":  scale * jax.random.normal(ks[5], (1, d_out), jnp.float32),
        "wf0": scale * jax.random.normal(ks[6], (hidden, hidden), jnp.float32),
        "bf0": scale * jax.random.normal(ks[7], (1, hidden), jnp.float32),
        "wf1": scale * jax.random.normal(ks[8], (hidden, hidden), jnp.float32),
        "bf1": scale * jax.random.normal(ks[9], (1, hidden), jnp.float32),
        # nn.Parameter(torch.randn(())) -> scalar multimeter mixing parameter
        "p":   jax.random.normal(ks[10], (1,), jnp.float32),
    }


if __name__ == "__main__":
    # Batch 256 with tile_b=128 -> 2 parallel grid steps (uses both v7x cores,
    # trivially loops on v5e/v6e). Feature dims kept small per the module spec.
    B, D_IN, HIDDEN, D_OUT = 256, 16, 32, 8

    key = jax.random.PRNGKey(0)
    k_x, k_p = jax.random.split(key)
    x = jax.random.normal(k_x, (B, D_IN), jnp.float32)
    params = _init_params(k_p, D_IN, HIDDEN, D_OUT)

    out = combined_network(x, params, tile_b=128)
    out = jax.block_until_ready(out)

    ref = _reference(x, params)
    assert out.shape == (B, D_OUT)
    # bf16 MXU operands with f32 accumulation -> compare to f32 reference with
    # a correspondingly loosened tolerance.
    assert jnp.allclose(out, ref, atol=2e-2, rtol=2e-2), "mismatch vs reference"

    print("KERNEL_OK")
</pallas_src>

<mosaic_0001>
module attributes {stable_mosaic.version = 11 : i64} {
  func.func @_combined_kernel(%arg0: i32, %arg1: memref<1xf32, #tpu.memory_space<smem>>, %arg2: memref<128x16xbf16, #tpu.memory_space<vmem>>, %arg3: memref<16x32xbf16, #tpu.memory_space<vmem>>, %arg4: memref<1x32xf32, #tpu.memory_space<vmem>>, %arg5: memref<32x32xbf16, #tpu.memory_space<vmem>>, %arg6: memref<1x32xf32, #tpu.memory_space<vmem>>, %arg7: memref<32x128xbf16, #tpu.memory_space<vmem>>, %arg8: memref<1x128xf32, #tpu.memory_space<vmem>>, %arg9: memref<32x32xbf16, #tpu.memory_space<vmem>>, %arg10: memref<1x32xf32, #tpu.memory_space<vmem>>, %arg11: memref<32x32xbf16, #tpu.memory_space<vmem>>, %arg12: memref<1x32xf32, #tpu.memory_space<vmem>>, %arg13: memref<128x128xf32, #tpu.memory_space<vmem>>) attributes {dimension_semantics = [#tpu.dimension_semantics<parallel>], iteration_bounds = array<i64: 2>, scalar_prefetch = 0 : i64, scratch_operands = 0 : i64, tpu.core_type = #tpu.core_type<tc>, window_params = [{transform_indices = @transform_0, window_bounds = array<i64: 1>}, {transform_indices = @transform_1, window_bounds = array<i64: 128, 16>}, {pipeline_mode = #tpu.pipeline_mode<synchronous>, transform_indices = @transform_2, window_bounds = array<i64: 16, 32>}, {pipeline_mode = #tpu.pipeline_mode<synchronous>, transform_indices = @transform_3, window_bounds = array<i64: 1, 32>}, {pipeline_mode = #tpu.pipeline_mode<synchronous>, transform_indices = @transform_4, window_bounds = array<i64: 32, 32>}, {pipeline_mode = #tpu.pipeline_mode<synchronous>, transform_indices = @transform_5, window_bounds = array<i64: 1, 32>}, {pipeline_mode = #tpu.pipeline_mode<synchronous>, transform_indices = @transform_6, window_bounds = array<i64: 32, 128>}, {pipeline_mode = #tpu.pipeline_mode<synchronous>, transform_indices = @transform_7, window_bounds = array<i64: 1, 128>}, {pipeline_mode = #tpu.pipeline_mode<synchronous>, transform_indices = @transform_8, window_bounds = array<i64: 32, 32>}, {pipeline_mode = #tpu.pipeline_mode<synchronous>, transform_indices = @transform_9, window_bounds = array<i64: 1, 32>}, {pipeline_mode = #tpu.pipeline_mode<synchronous>, transform_indices = @transform_10, window_bounds = array<i64: 32, 32>}, {pipeline_mode = #tpu.pipeline_mode<synchronous>, transform_indices = @transform_11, window_bounds = array<i64: 1, 32>}, {transform_indices = @transform_12, window_bounds = array<i64: 128, 128>}]} {
    %c0 = arith.constant 0 : index
    %0 = memref.load %arg1[%c0] : memref<1xf32, #tpu.memory_space<smem>>
    %c0_0 = arith.constant 0 : index
    %c0_1 = arith.constant 0 : index
    %1 = vector.load %arg2[%c0_0, %c0_1] : memref<128x16xbf16, #tpu.memory_space<vmem>>, vector<128x16xbf16>
    %c0_2 = arith.constant 0 : index
    %c0_3 = arith.constant 0 : index
    %2 = vector.load %arg3[%c0_2, %c0_3] : memref<16x32xbf16, #tpu.memory_space<vmem>>, vector<16x32xbf16>
    %cst = arith.constant dense<0.000000e+00> : vector<128x32xf32>
    %3 = tpu.matmul %1, %2, %cst {dimension_numbers = #tpu.dot_dimension_numbers<[1], [0], [0], [1], [0, 0, 1, 1], [], []>} : vector<128x16xbf16>, vector<16x32xbf16>, vector<128x32xf32> -> vector<128x32xf32>
    %c0_4 = arith.constant 0 : index
    %c0_5 = arith.constant 0 : index
    %4 = vector.load %arg4[%c0_4, %c0_5] : memref<1x32xf32, #tpu.memory_space<vmem>>, vector<1x32xf32>
    %5 = vector.broadcast %4 : vector<1x32xf32> to vector<128x32xf32>
    %6 = arith.addf %3, %5 : vector<128x32xf32>
    %7 = arith.truncf %6 : vector<128x32xf32> to vector<128x32xbf16>
    %c0_6 = arith.constant 0 : index
    %c0_7 = arith.constant 0 : index
    %8 = vector.load %arg9[%c0_6, %c0_7] : memref<32x32xbf16, #tpu.memory_space<vmem>>, vector<32x32xbf16>
    %cst_8 = arith.constant dense<0.000000e+00> : vector<128x32xf32>
    %9 = tpu.matmul %7, %8, %cst_8 {dimension_numbers = #tpu.dot_dimension_numbers<[1], [0], [0], [1], [0, 0, 1, 1], [], []>} : vector<128x32xbf16>, vector<32x32xbf16>, vector<128x32xf32> -> vector<128x32xf32>
    %c0_9 = arith.constant 0 : index
    %c0_10 = arith.constant 0 : index
    %10 = vector.load %arg10[%c0_9, %c0_10] : memref<1x32xf32, #tpu.memory_space<vmem>>, vector<1x32xf32>
    %11 = vector.broadcast %10 : vector<1x32xf32> to vector<128x32xf32>
    %12 = arith.addf %9, %11 : vector<128x32xf32>
    %cst_11 = arith.constant 0.000000e+00 : f32
    %13 = vector.broadcast %cst_11 : f32 to vector<128x32xf32>
    %14 = arith.maximumf %12, %13 : vector<128x32xf32>
    %15 = arith.truncf %14 : vector<128x32xf32> to vector<128x32xbf16>
    %c0_12 = arith.constant 0 : index
    %c0_13 = arith.constant 0 : index
    %16 = vector.load %arg11[%c0_12, %c0_13] : memref<32x32xbf16, #tpu.memory_space<vmem>>, vector<32x32xbf16>
    %cst_14 = arith.constant dense<0.000000e+00> : vector<128x32xf32>
    %17 = tpu.matmul %15, %16, %cst_14 {dimension_numbers = #tpu.dot_dimension_numbers<[1], [0], [0], [1], [0, 0, 1, 1], [], []>} : vector<128x32xbf16>, vector<32x32xbf16>, vector<128x32xf32> -> vector<128x32xf32>
    %c0_15 = arith.constant 0 : index
    %c0_16 = arith.constant 0 : index
    %18 = vector.load %arg12[%c0_15, %c0_16] : memref<1x32xf32, #tpu.memory_space<vmem>>, vector<1x32xf32>
    %19 = vector.broadcast %18 : vector<1x32xf32> to vector<128x32xf32>
    %20 = arith.addf %17, %19 : vector<128x32xf32>
    %cst_17 = arith.constant 0.000000e+00 : f32
    %21 = vector.broadcast %cst_17 : f32 to vector<128x32xf32>
    %22 = arith.maximumf %6, %21 : vector<128x32xf32>
    %23 = arith.truncf %22 : vector<128x32xf32> to vector<128x32xbf16>
    %c0_18 = arith.constant 0 : index
    %c0_19 = arith.constant 0 : index
    %24 = vector.load %arg5[%c0_18, %c0_19] : memref<32x32xbf16, #tpu.memory_space<vmem>>, vector<32x32xbf16>
    %cst_20 = arith.constant dense<0.000000e+00> : vector<128x32xf32>
    %25 = tpu.matmul %23, %24, %cst_20 {dimension_numbers = #tpu.dot_dimension_numbers<[1], [0], [0], [1], [0, 0, 1, 1], [], []>} : vector<128x32xbf16>, vector<32x32xbf16>, vector<128x32xf32> -> vector<128x32xf32>
    %c0_21 = arith.constant 0 : index
    %c0_22 = arith.constant 0 : index
    %26 = vector.load %arg6[%c0_21, %c0_22] : memref<1x32xf32, #tpu.memory_space<vmem>>, vector<1x32xf32>
    %27 = vector.broadcast %26 : vector<1x32xf32> to vector<128x32xf32>
    %28 = arith.addf %25, %27 : vector<128x32xf32>
    %29 = vector.broadcast %0 : f32 to vector<128x32xf32>
    %30 = arith.mulf %29, %20 : vector<128x32xf32>
    %31 = arith.addf %28, %30 : vector<128x32xf32>
    %cst_23 = arith.constant 0.000000e+00 : f32
    %32 = vector.broadcast %cst_23 : f32 to vector<128x32xf32>
    %33 = arith.maximumf %31, %32 : vector<128x32xf32>
    %34 = arith.truncf %33 : vector<128x32xf32> to vector<128x32xbf16>
    %c0_24 = arith.constant 0 : index
    %c0_25 = arith.constant 0 : index
    %35 = vector.load %arg7[%c0_24, %c0_25] : memref<32x128xbf16, #tpu.memory_space<vmem>>, vector<32x128xbf16>
    %cst_26 = arith.constant dense<0.000000e+00> : vector<128x128xf32>
    %36 = tpu.matmul %34, %35, %cst_26 {dimension_numbers = #tpu.dot_dimension_numbers<[1], [0], [0], [1], [0, 0, 1, 1], [], []>} : vector<128x32xbf16>, vector<32x128xbf16>, vector<128x128xf32> -> vector<128x128xf32>
    %c0_27 = arith.constant 0 : index
    %c0_28 = arith.constant 0 : index
    %37 = vector.load %arg8[%c0_27, %c0_28] : memref<1x128xf32, #tpu.memory_space<vmem>>, vector<1x128xf32>
    %38 = vector.broadcast %37 : vector<1x128xf32> to vector<128x128xf32>
    %39 = arith.addf %36, %38 : vector<128x128xf32>
    %c0_29 = arith.constant 0 : index
    %c0_30 = arith.constant 0 : index
    %40 = vector.load %arg13[%c0_29, %c0_30] : memref<128x128xf32, #tpu.memory_space<vmem>>, vector<128x128xf32>
    tpu.vector_store %arg13[%c0_29, %c0_30], %39 {strides = array<i32>} : memref<128x128xf32, #tpu.memory_space<vmem>>, vector<128x128xf32>,
    return
  }
  func.func @transform_0(%arg0: i32) -> i32 {
    %c0_i32 = arith.constant 0 : i32
    %c0_i32_0 = arith.constant 0 : i32
    return %c0_i32 : i32
  }
  func.func @transform_1(%arg0: i32) -> (i32, i32) {
    %c0_i32 = arith.constant 0 : i32
    %c0_i32_0 = arith.constant 0 : i32
    return %arg0, %c0_i32 : i32, i32
  }
  func.func @transform_2(%arg0: i32) -> (i32, i32) {
    %c0_i32 = arith.constant 0 : i32
    %c0_i32_0 = arith.constant 0 : i32
    %c0_i32_1 = arith.constant 0 : i32
    return %c0_i32, %c0_i32_0 : i32, i32
  }
  func.func @transform_3(%arg0: i32) -> (i32, i32) {
    %c0_i32 = arith.constant 0 : i32
    %c0_i32_0 = arith.constant 0 : i32
    %c0_i32_1 = arith.constant 0 : i32
    return %c0_i32, %c0_i32_0 : i32, i32
  }
  func.func @transform_4(%arg0: i32) -> (i32, i32) {
    %c0_i32 = arith.constant 0 : i32
    %c0_i32_0 = arith.constant 0 : i32
    %c0_i32_1 = arith.constant 0 : i32
    return %c0_i32, %c0_i32_0 : i32, i32
  }
  func.func @transform_5(%arg0: i32) -> (i32, i32) {
    %c0_i32 = arith.constant 0 : i32
    %c0_i32_0 = arith.constant 0 : i32
    %c0_i32_1 = arith.constant 0 : i32
    return %c0_i32, %c0_i32_0 : i32, i32
  }
  func.func @transform_6(%arg0: i32) -> (i32, i32) {
    %c0_i32 = arith.constant 0 : i32
    %c0_i32_0 = arith.constant 0 : i32
    %c0_i32_1 = arith.constant 0 : i32
    return %c0_i32, %c0_i32_0 : i32, i32
  }
  func.func @transform_7(%arg0: i32) -> (i32, i32) {
    %c0_i32 = arith.constant 0 : i32
    %c0_i32_0 = arith.constant 0 : i32
    %c0_i32_1 = arith.constant 0 : i32
    return %c0_i32, %c0_i32_0 : i32, i32
  }
  func.func @transform_8(%arg0: i32) -> (i32, i32) {
    %c0_i32 = arith.constant 0 : i32
    %c0_i32_0 = arith.constant 0 : i32
    %c0_i32_1 = arith.constant 0 : i32
    return %c0_i32, %c0_i32_0 : i32, i32
  }
  func.func @transform_9(%arg0: i32) -> (i32, i32) {
    %c0_i32 = arith.constant 0 : i32
    %c0_i32_0 = arith.constant 0 : i32
    %c0_i32_1 = arith.constant 0 : i32
    return %c0_i32, %c0_i32_0 : i32, i32
  }
  func.func @transform_10(%arg0: i32) -> (i32, i32) {
    %c0_i32 = arith.constant 0 : i32
    %c0_i32_0 = arith.constant 0 : i32
    %c0_i32_1 = arith.constant 0 : i32
    return %c0_i32, %c0_i32_0 : i32, i32
  }
  func.func @transform_11(%arg0: i32) -> (i32, i32) {
    %c0_i32 = arith.constant 0 : i32
    %c0_i32_0 = arith.constant 0 : i32
    %c0_i32_1 = arith.constant 0 : i32
    return %c0_i32, %c0_i32_0 : i32, i32
  }
  func.func @transform_12(%arg0: i32) -> (i32, i32) {
    %c0_i32 = arith.constant 0 : i32
    %c0_i32_0 = arith.constant 0 : i32
    return %arg0, %c0_i32 : i32, i32
  }
}

</mosaic_0001>

<llo_original>
// kernel: combined_network.1
$region0: #{combined_network.1}
  #allocation0 [shape = 'u32[]', space=smem, size = 0x4, offset = 0x4, fixed_abs, tag = 'smem constant byte address 0x4 - core index']
  #allocation1 [shape = 'u32[144,128]{1,0:T(1,128)}', space=vmem, size = 0x12000, scoped, tag = 'internal scratch']
  #allocation2 [shape = 'f32[1]{0:T(128)S(6)}', space=smem, size = 0x200, scoped, tag = 'scoped memory for combined_network.1']
  %s0 = inlined_call_operand.<no memory space> [shape: f32[1], index: 0, kind: input, shape index: {}]
  %s1 = inlined_call_operand.vmem [shape: bf16[256,16], index: 1, kind: input, shape index: {}]
  %s2 = inlined_call_operand.vmem [shape: bf16[16,32], index: 2, kind: input, shape index: {}]
  %s3 = inlined_call_operand.vmem [shape: f32[1,32], index: 3, kind: input, shape index: {}]
  %s4 = inlined_call_operand.vmem [shape: bf16[32,32], index: 4, kind: input, shape index: {}]
  %s5 = inlined_call_operand.vmem [shape: f32[1,32], index: 5, kind: input, shape index: {}]
  %s6 = inlined_call_operand.vmem [shape: bf16[32,128], index: 6, kind: input, shape index: {}]
  %s7 = inlined_call_operand.vmem [shape: f32[1,128], index: 7, kind: input, shape index: {}]
  %s8 = inlined_call_operand.vmem [shape: bf16[32,32], index: 8, kind: input, shape index: {}]
  %s9 = inlined_call_operand.vmem [shape: f32[1,32], index: 9, kind: input, shape index: {}]
  %s10 = inlined_call_operand.vmem [shape: bf16[32,32], index: 10, kind: input, shape index: {}]
  %s11 = inlined_call_operand.vmem [shape: f32[1,32], index: 11, kind: input, shape index: {}]
  %s12 = inlined_call_operand.vmem [shape: f32[256,128], index: 12, kind: output, shape index: {}]
  %s13 = sld [smem:[#allocation0]]
  $region81: #{combined_network.1} parent=0
    _
  %s15 = ssub.s32 1, %s13
  %s16 = scalar_select 0, %s15, %s13
  %17 = sst [smem:[#allocation2]] %s0
  loop: start=0, step=1, limit=4
  $region2: #{combined_network.1} parent=0 // loop_pre_header
    _
  $region3: #{combined_network.1} parent=0 // loop_header
    %s19 = sphi 0, %s23
    %p20 = scmp.ge.s32.totalorder %s19, 4
    %s27 = sphi 0, %s27
    %s29 = sphi 0, %s27
    %s30 = sphi 0, %s29
    %s44 = sphi 0, %s30
    %s50 = sphi 0, %s52
    %s53 = sphi 0, %s50
    %s54 = sphi 0, %s53
    %s70 = sphi 0, %s54
    %s74 = sphi 0, %s74
    %s76 = sphi 0, %s74
    %s77 = sphi 0, %s76
    %s91 = sphi 0, %s77
    %s95 = sphi 0, %s95
    %s97 = sphi 0, %s95
    %s98 = sphi 0, %s97
    %s112 = sphi 0, %s98
    %s116 = sphi 0, %s116
    %s118 = sphi 0, %s116
    %s119 = sphi 0, %s118
    %s133 = sphi 0, %s119
    %s137 = sphi 0, %s137
    %s139 = sphi 0, %s137
    %s140 = sphi 0, %s139
    %s154 = sphi 0, %s140
    %s158 = sphi 0, %s158
    %s160 = sphi 0, %s158
    %s161 = sphi 0, %s160
    %s175 = sphi 0, %s161
    %s179 = sphi 0, %s179
    %s181 = sphi 0, %s179
    %s182 = sphi 0, %s181
    %s196 = sphi 0, %s182
    %s200 = sphi 0, %s200
    %s202 = sphi 0, %s200
    %s203 = sphi 0, %s202
    %s217 = sphi 0, %s203
    %s221 = sphi 0, %s221
    %s223 = sphi 0, %s221
    %s224 = sphi 0, %s223
    %s238 = sphi 0, %s224
    %s242 = sphi 0, %s242
    %s244 = sphi 0, %s242
    %s245 = sphi 0, %s244
    %s259 = sphi 0, %s245
    %s263 = sphi 0, %s263
    %s265 = sphi 0, %s263
    %s266 = sphi 0, %s265
    %s280 = sphi 0, %s266
    %s286 = sphi 0, %s288
    %s289 = sphi 0, %s286
    %s290 = sphi 0, %s289
    %s306 = sphi 0, %s290
  $region4: #{combined_network.1} parent=0 // loop_header_branch
    %22 = sbr.rel (%p20) target = $region8
  $region5: #{combined_network.1} parent=0 // loop_body
    %s24 = ssub.s32 %s19, 1
    %s25 = ssub.s32 %s19, 2
    %s26 = sadd.s32 %s19, 1
    %s28 = sadd.s32 %s27, 1
    %p31 = scmp.eq.s32.totalorder %s19, 1
    %p32 = scmp.ne.s32.totalorder %s27, %s29
    %p33 = scmp.eq.s32.totalorder %s19, 0
    %p34 = por %p32, %p33
    %p35 = scmp.ne.s32.totalorder %s27, %s29
    %p36 = scmp.eq.s32.totalorder %s24, 1
    %p37 = por %p35, %p36
    %p38 = scmp.ne.s32.totalorder %s29, %s30
    %p39 = scmp.eq.s32.totalorder %s24, 0
    %p40 = por %p38, %p39
    %p41 = scmp.ne.s32.totalorder %s29, %s30
    %p42 = scmp.eq.s32.totalorder %s25, 1
    %p43 = por %p41, %p42
    %p45 = scmp.ne.s32.totalorder %s30, %s44
    %p46 = scmp.eq.s32.totalorder %s25, 0
    %p47 = por %p45, %p46
    %s48 = ssub.s32 %s19, %s26
    %p49 = scmp.eq.s32.totalorder %s48, 0
    %s51 = sadd.s32 %s50, 1
    %s52 = scalar_select %p49, %s50, %s51
    %p55 = pneg %p49
    %p56 = scmp.eq.s32.totalorder %s19, 1
    %p57 = por %p55, %p56
    %p58 = scmp.ne.s32.totalorder %s50, %s53
    %p59 = scmp.eq.s32.totalorder %s19, 0
    %p60 = por %p58, %p59
    %p61 = scmp.ne.s32.totalorder %s50, %s53
    %p62 = scmp.eq.s32.totalorder %s24, 1
    %p63 = por %p61, %p62
    %p64 = scmp.ne.s32.totalorder %s53, %s54
    %p65 = scmp.eq.s32.totalorder %s24, 0
    %p66 = por %p64, %p65
    %p67 = scmp.ne.s32.totalorder %s53, %s54
    %p68 = scmp.eq.s32.totalorder %s25, 1
    %p69 = por %p67, %p68
    %p71 = scmp.ne.s32.totalorder %s54, %s70
    %p72 = scmp.eq.s32.totalorder %s25, 0
    %p73 = por %p71, %p72
    %s75 = sadd.s32 %s74, 1
    %p78 = scmp.eq.s32.totalorder %s19, 1
    %p79 = scmp.ne.s32.totalorder %s74, %s76
    %p80 = scmp.eq.s32.totalorder %s19, 0
    %p81 = por %p79, %p80
    %p82 = scmp.ne.s32.totalorder %s74, %s76
    %p83 = scmp.eq.s32.totalorder %s24, 1
    %p84 = por %p82, %p83
    %p85 = scmp.ne.s32.totalorder %s76, %s77
    %p86 = scmp.eq.s32.totalorder %s24, 0
    %p87 = por %p85, %p86
    %p88 = scmp.ne.s32.totalorder %s76, %s77
    %p89 = scmp.eq.s32.totalorder %s25, 1
    %p90 = por %p88, %p89
    %p92 = scmp.ne.s32.totalorder %s77, %s91
    %p93 = scmp.eq.s32.totalorder %s25, 0
    %p94 = por %p92, %p93
    %s96 = sadd.s32 %s95, 1
    %p99 = scmp.eq.s32.totalorder %s19, 1
    %p100 = scmp.ne.s32.totalorder %s95, %s97
    %p101 = scmp.eq.s32.totalorder %s19, 0
    %p102 = por %p100, %p101
    %p103 = scmp.ne.s32.totalorder %s95, %s97
    %p104 = scmp.eq.s32.totalorder %s24, 1
    %p105 = por %p103, %p104
    %p106 = scmp.ne.s32.totalorder %s97, %s98
    %p107 = scmp.eq.s32.totalorder %s24, 0
    %p108 = por %p106, %p107
    %p109 = scmp.ne.s32.totalorder %s97, %s98
    %p110 = scmp.eq.s32.totalorder %s25, 1
    %p111 = por %p109, %p110
    %p113 = scmp.ne.s32.totalorder %s98, %s112
    %p114 = scmp.eq.s32.totalorder %s25, 0
    %p115 = por %p113, %p114
    %s117 = sadd.s32 %s116, 1
    %p120 = scmp.eq.s32.totalorder %s19, 1
    %p121 = scmp.ne.s32.totalorder %s116, %s118
    %p122 = scmp.eq.s32.totalorder %s19, 0
    %p123 = por %p121, %p122
    %p124 = scmp.ne.s32.totalorder %s116, %s118
    %p125 = scmp.eq.s32.totalorder %s24, 1
    %p126 = por %p124, %p125
    %p127 = scmp.ne.s32.totalorder %s118, %s119
    %p128 = scmp.eq.s32.totalorder %s24, 0
    %p129 = por %p127, %p128
    %p130 = scmp.ne.s32.totalorder %s118, %s119
    %p131 = scmp.eq.s32.totalorder %s25, 1
    %p132 = por %p130, %p131
    %p134 = scmp.ne.s32.totalorder %s119, %s133
    %p135 = scmp.eq.s32.totalorder %s25, 0
    %p136 = por %p134, %p135
    %s138 = sadd.s32 %s137, 1
    %p141 = scmp.eq.s32.totalorder %s19, 1
    %p142 = scmp.ne.s32.totalorder %s137, %s139
    %p143 = scmp.eq.s32.totalorder %s19, 0
    %p144 = por %p142, %p143
    %p145 = scmp.ne.s32.totalorder %s137, %s139
    %p146 = scmp.eq.s32.totalorder %s24, 1
    %p147 = por %p145, %p146
    %p148 = scmp.ne.s32.totalorder %s139, %s140
    %p149 = scmp.eq.s32.totalorder %s24, 0
    %p150 = por %p148, %p149
    %p151 = scmp.ne.s32.totalorder %s139, %s140
    %p152 = scmp.eq.s32.totalorder %s25, 1
    %p153 = por %p151, %p152
    %p155 = scmp.ne.s32.totalorder %s140, %s154
    %p156 = scmp.eq.s32.totalorder %s25, 0
    %p157 = por %p155, %p156
    %s159 = sadd.s32 %s158, 1
    %p162 = scmp.eq.s32.totalorder %s19, 1
    %p163 = scmp.ne.s32.totalorder %s158, %s160
    %p164 = scmp.eq.s32.totalorder %s19, 0
    %p165 = por %p163, %p164
    %p166 = scmp.ne.s32.totalorder %s158, %s160
    %p167 = scmp.eq.s32.totalorder %s24, 1
    %p168 = por %p166, %p167
    %p169 = scmp.ne.s32.totalorder %s160, %s161
    %p170 = scmp.eq.s32.totalorder %s24, 0
    %p171 = por %p169, %p170
    %p172 = scmp.ne.s32.totalorder %s160, %s161
    %p173 = scmp.eq.s32.totalorder %s25, 1
    %p174 = por %p172, %p173
    %p176 = scmp.ne.s32.totalorder %s161, %s175
    %p177 = scmp.eq.s32.totalorder %s25, 0
    %p178 = por %p176, %p177
    %s180 = sadd.s32 %s179, 1
    %p183 = scmp.eq.s32.totalorder %s19, 1
    %p184 = scmp.ne.s32.totalorder %s179, %s181
    %p185 = scmp.eq.s32.totalorder %s19, 0
    %p186 = por %p184, %p185
    %p187 = scmp.ne.s32.totalorder %s179, %s181
    %p188 = scmp.eq.s32.totalorder %s24, 1
    %p189 = por %p187, %p188
    %p190 = scmp.ne.s32.totalorder %s181, %s182
    %p191 = scmp.eq.s32.totalorder %s24, 0
    %p192 = por %p190, %p191
    %p193 = scmp.ne.s32.totalorder %s181, %s182
    %p194 = scmp.eq.s32.totalorder %s25, 1
    %p195 = por %p193, %p194
    %p197 = scmp.ne.s32.totalorder %s182, %s196
    %p198 = scmp.eq.s32.totalorder %s25, 0
    %p199 = por %p197, %p198
    %s201 = sadd.s32 %s200, 1
    %p204 = scmp.eq.s32.totalorder %s19, 1
    %p205 = scmp.ne.s32.totalorder %s200, %s202
    %p206 = scmp.eq.s32.totalorder %s19, 0
    %p207 = por %p205, %p206
    %p208 = scmp.ne.s32.totalorder %s200, %s202
    %p209 = scmp.eq.s32.totalorder %s24, 1
    %p210 = por %p208, %p209
    %p211 = scmp.ne.s32.totalorder %s202, %s203
    %p212 = scmp.eq.s32.totalorder %s24, 0
    %p213 = por %p211, %p212
    %p214 = scmp.ne.s32.totalorder %s202, %s203
    %p215 = scmp.eq.s32.totalorder %s25, 1
    %p216 = por %p214, %p215
    %p218 = scmp.ne.s32.totalorder %s203, %s217
    %p219 = scmp.eq.s32.totalorder %s25, 0
    %p220 = por %p218, %p219
    %s222 = sadd.s32 %s221, 1
    %p225 = scmp.eq.s32.totalorder %s19, 1
    %p226 = scmp.ne.s32.totalorder %s221, %s223
    %p227 = scmp.eq.s32.totalorder %s19, 0
    %p228 = por %p226, %p227
    %p229 = scmp.ne.s32.totalorder %s221, %s223
    %p230 = scmp.eq.s32.totalorder %s24, 1
    %p231 = por %p229, %p230
    %p232 = scmp.ne.s32.totalorder %s223, %s224
    %p233 = scmp.eq.s32.totalorder %s24, 0
    %p234 = por %p232, %p233
    %p235 = scmp.ne.s32.totalorder %s223, %s224
    %p236 = scmp.eq.s32.totalorder %s25, 1
    %p237 = por %p235, %p236
    %p239 = scmp.ne.s32.totalorder %s224, %s238
    %p240 = scmp.eq.s32.totalorder %s25, 0
    %p241 = por %p239, %p240
    %s243 = sadd.s32 %s242, 1
    %p246 = scmp.eq.s32.totalorder %s19, 1
    %p247 = scmp.ne.s32.totalorder %s242, %s244
    %p248 = scmp.eq.s32.totalorder %s19, 0
    %p249 = por %p247, %p248
    %p250 = scmp.ne.s32.totalorder %s242, %s244
    %p251 = scmp.eq.s32.totalorder %s24, 1
    %p252 = por %p250, %p251
    %p253 = scmp.ne.s32.totalorder %s244, %s245
    %p254 = scmp.eq.s32.totalorder %s24, 0
    %p255 = por %p253, %p254
    %p256 = scmp.ne.s32.totalorder %s244, %s245
    %p257 = scmp.eq.s32.totalorder %s25, 1
    %p258 = por %p256, %p257
    %p260 = scmp.ne.s32.totalorder %s245, %s259
    %p261 = scmp.eq.s32.totalorder %s25, 0
    %p262 = por %p260, %p261
    %s264 = sadd.s32 %s263, 1
    %p267 = scmp.eq.s32.totalorder %s19, 1
    %p268 = scmp.ne.s32.totalorder %s263, %s265
    %p269 = scmp.eq.s32.totalorder %s19, 0
    %p270 = por %p268, %p269
    %p271 = scmp.ne.s32.totalorder %s263, %s265
    %p272 = scmp.eq.s32.totalorder %s24, 1
    %p273 = por %p271, %p272
    %p274 = scmp.ne.s32.totalorder %s265, %s266
    %p275 = scmp.eq.s32.totalorder %s24, 0
    %p276 = por %p274, %p275
    %p277 = scmp.ne.s32.totalorder %s265, %s266
    %p278 = scmp.eq.s32.totalorder %s25, 1
    %p279 = por %p277, %p278
    %p281 = scmp.ne.s32.totalorder %s266, %s280
    %p282 = scmp.eq.s32.totalorder %s25, 0
    %p283 = por %p281, %p282
    %s284 = ssub.s32 %s19, %s26
    %p285 = scmp.eq.s32.totalorder %s284, 0
    %s287 = sadd.s32 %s286, 1
    %s288 = scalar_select %p285, %s286, %s287
    %p291 = pneg %p285
    %p292 = scmp.eq.s32.totalorder %s19, 1
    %p293 = por %p291, %p292
    %p294 = scmp.ne.s32.totalorder %s286, %s289
    %p295 = scmp.eq.s32.totalorder %s19, 0
    %p296 = por %p294, %p295
    %p297 = scmp.ne.s32.totalorder %s286, %s289
    %p298 = scmp.eq.s32.totalorder %s24, 1
    %p299 = por %p297, %p298
    %p300 = scmp.ne.s32.totalorder %s289, %s290
    %p301 = scmp.eq.s32.totalorder %s24, 0
    %p302 = por %p300, %p301
    %p303 = scmp.ne.s32.totalorder %s289, %s290
    %p304 = scmp.eq.s32.totalorder %s25, 1
    %p305 = por %p303, %p304
    %p307 = scmp.ne.s32.totalorder %s290, %s306
    %p308 = scmp.eq.s32.totalorder %s25, 0
    %p309 = por %p307, %p308
    %p310 = scmp.le.s32.totalorder 1, %s19
    %p311 = scmp.lt.s32.totalorder %s19, 3
    %p312 = pnand %p310, %p311
    %p313 = pneg %p312
    // Predicated region
    $region9: #{combined_network.1} parent=5 // pred_check
      _
    $region10: #{combined_network.1} parent=5 // pred_check_branch
      %315 = sbr.rel (%p312) target = $region12
    $region11: #{combined_network.1} parent=5 // pred_region
      %s316 = ssub.s32 %s19, 1
      // Predicated region
      $region13: #{combined_network.1} parent=11 // pred_check
        %p317 = pneg %p40
      $region14: #{combined_network.1} parent=11 // pred_check_branch
        %319 = sbr.rel (%p317) target = $region16
      $region15: #{combined_network.1} parent=11 // pred_region
        _
      $region16: #{combined_network.1} parent=11 // pred_fallthru
        _
      // Predicated region
      $region17: #{combined_network.1} parent=11 // pred_check
        %p320 = pneg %p87
      $region18: #{combined_network.1} parent=11 // pred_check_branch
        %322 = sbr.rel (%p320) target = $region20
      $region19: #{combined_network.1} parent=11 // pred_region
        _
      $region20: #{combined_network.1} parent=11 // pred_fallthru
        _
      // Predicated region
      $region21: #{combined_network.1} parent=11 // pred_check
        %p323 = pneg %p108
      $region22: #{combined_network.1} parent=11 // pred_check_branch
        %325 = sbr.rel (%p323) target = $region24
      $region23: #{combined_network.1} parent=11 // pred_region
        _
      $region24: #{combined_network.1} parent=11 // pred_fallthru
        _
      // Predicated region
      $region25: #{combined_network.1} parent=11 // pred_check
        %p326 = pneg %p129
      $region26: #{combined_network.1} parent=11 // pred_check_branch
        %328 = sbr.rel (%p326) target = $region28
      $region27: #{combined_network.1} parent=11 // pred_region
        _
      $region28: #{combined_network.1} parent=11 // pred_fallthru
        _
      // Predicated region
      $region29: #{combined_network.1} parent=11 // pred_check
        %p329 = pneg %p150
      $region30: #{combined_network.1} parent=11 // pred_check_branch
        %331 = sbr.rel (%p329) target = $region32
      $region31: #{combined_network.1} parent=11 // pred_region
        _
      $region32: #{combined_network.1} parent=11 // pred_fallthru
        _
      // Predicated region
      $region33: #{combined_network.1} parent=11 // pred_check
        %p332 = pneg %p171
      $region34: #{combined_network.1} parent=11 // pred_check_branch
        %334 = sbr.rel (%p332) target = $region36
      $region35: #{combined_network.1} parent=11 // pred_region
        _
      $region36: #{combined_network.1} parent=11 // pred_fallthru
        _
      // Predicated region
      $region37: #{combined_network.1} parent=11 // pred_check
        %p335 = pneg %p192
      $region38: #{combined_network.1} parent=11 // pred_check_branch
        %337 = sbr.rel (%p335) target = $region40
      $region39: #{combined_network.1} parent=11 // pred_region
        _
      $region40: #{combined_network.1} parent=11 // pred_fallthru
        _
      // Predicated region
      $region41: #{combined_network.1} parent=11 // pred_check
        %p338 = pneg %p213
      $region42: #{combined_network.1} parent=11 // pred_check_branch
        %340 = sbr.rel (%p338) target = $region44
      $region43: #{combined_network.1} parent=11 // pred_region
        _
      $region44: #{combined_network.1} parent=11 // pred_fallthru
        _
      // Predicated region
      $region45: #{combined_network.1} parent=11 // pred_check
        %p341 = pneg %p234
      $region46: #{combined_network.1} parent=11 // pred_check_branch
        %343 = sbr.rel (%p341) target = $region48
      $region47: #{combined_network.1} parent=11 // pred_region
        _
      $region48: #{combined_network.1} parent=11 // pred_fallthru
        _
      // Predicated region
      $region49: #{combined_network.1} parent=11 // pred_check
        %p344 = pneg %p255
      $region50: #{combined_network.1} parent=11 // pred_check_branch
        %346 = sbr.rel (%p344) target = $region52
      $region51: #{combined_network.1} parent=11 // pred_region
        _
      $region52: #{combined_network.1} parent=11 // pred_fallthru
        _
      // Predicated region
      $region53: #{combined_network.1} parent=11 // pred_check
        %p347 = pneg %p276
      $region54: #{combined_network.1} parent=11 // pred_check_branch
        %349 = sbr.rel (%p347) target = $region56
      $region55: #{combined_network.1} parent=11 // pred_region
        _
      $region56: #{combined_network.1} parent=11 // pred_fallthru
        _
    $region12: #{combined_network.1} parent=5 // pred_fallthru
      _
    %p350 = scmp.lt.s32.totalorder %s19, 2
    // Predicated region
    $region57: #{combined_network.1} parent=5 // pred_check
      %p351 = pneg %p350
    $region58: #{combined_network.1} parent=5 // pred_check_branch
      %353 = sbr.rel (%p351) target = $region60
    $region59: #{combined_network.1} parent=5 // pred_region
      // Predicated region
      $region61: #{combined_network.1} parent=59 // pred_check
        %p354 = pneg %p60
      $region62: #{combined_network.1} parent=59 // pred_check_branch
        %356 = sbr.rel (%p354) target = $region64
      $region63: #{combined_network.1} parent=59 // pred_region
        %s357 = smul.u32 16, %s19
        %p358 = scmp.lt.s32.totalorder %s357, 31
        %s359 = scalar_select %p358, %s357, 31
        %s360 = smul.addr %s359, 4
        %s361 = scalar_lea.vmem %s1, %s360
        %s362 = smul.u32 16, %s19
      $region64: #{combined_network.1} parent=59 // pred_fallthru
        _
    $region60: #{combined_network.1} parent=5 // pred_fallthru
      _
    %p363 = scmp.le.s32.totalorder 1, %s19
    %p364 = scmp.lt.s32.totalorder %s19, 3
    %p365 = pnand %p363, %p364
    %p366 = pneg %p365
    // Predicated region
    $region65: #{combined_network.1} parent=5 // pred_check
      _
    $region66: #{combined_network.1} parent=5 // pred_check_branch
      %368 = sbr.rel (%p365) target = $region68
    $region67: #{combined_network.1} parent=5 // pred_region
      %s369 = ssub.s32 %s19, 1
      %p370 = pneg %p40
      %p371 = pneg %p37
      %s372 = smul.u32 16, %s24
      %p373 = scmp.lt.s32.totalorder %s372, 31
      %s374 = scalar_select %p373, %s372, 31
      %s375 = smul.addr %s374, 4
      %s376 = scalar_lea.vmem %s1, %s375
      %p377 = pneg %p66
      %p378 = pneg %p63
      %p379 = pneg %p87
      %p380 = pneg %p84
      %p381 = pneg %p108
      %p382 = pneg %p105
      %p383 = pneg %p129
      %p384 = pneg %p126
      %p385 = pneg %p150
      %p386 = pneg %p147
      %p387 = pneg %p171
      %p388 = pneg %p168
      %p389 = pneg %p192
      %p390 = pneg %p189
      %p391 = pneg %p213
      %p392 = pneg %p210
      %p393 = pneg %p234
      %p394 = pneg %p231
      %p395 = pneg %p255
      %p396 = pneg %p252
      %p397 = pneg %p276
      %p398 = pneg %p273
      %p399 = pneg %p302
      %p400 = pneg %p299
      %s401 = smul.u32 16, %s24
      %p402 = scmp.lt.s32.totalorder %s401, 31
      %s403 = scalar_select %p402, %s401, 31
      %s404 = smul.addr %s403, 8
      %s405 = scalar_lea.vmem %s12, %s404
      %s406 = smul.u32 16, %s24
      %p407 = scmp.lt.s32.totalorder %s406, 31
      %s408 = scalar_select %p407, %s406, 31
      %s409 = smul.addr %s408, 4
      %s410 = scalar_lea.vmem %s1, %s409
      %s411 = smul.u32 16, %s24
      %s412 = smul.u32 16, %s24
      %p413 = scmp.lt.s32.totalorder %s412, 31
      %s414 = scalar_select %p413, %s412, 31
      %s415 = smul.addr %s414, 8
      %s416 = scalar_lea.vmem %s12, %s415
      %s417 = smul.u32 16, %s24
      %s419 = sld [smem:[#allocation2]]
      %v420 = vld [vmem:[%s410] sm:$0xf]
      %v421 = vld [vmem:[%s410 + $0x4] sm:$0xf]
      %v422 = vld [vmem:[%s410 + $0x8] sm:$0xf]
      %v423 = vld [vmem:[%s410 + $0xc] sm:$0xf]
      %v424 = vld [vmem:[%s410 + $0x10] sm:$0xf]
      %v425 = vld [vmem:[%s410 + $0x14] sm:$0xf]
      %v426 = vld [vmem:[%s410 + $0x18] sm:$0xf]
      %v427 = vld [vmem:[%s410 + $0x1c] sm:$0xf]
      %v428 = vld [vmem:[%s410 + $0x20] sm:$0xf]
      %v429 = vld [vmem:[%s410 + $0x24] sm:$0xf]
      %v430 = vld [vmem:[%s410 + $0x28] sm:$0xf]
      %v431 = vld [vmem:[%s410 + $0x2c] sm:$0xf]
      %v432 = vld [vmem:[%s410 + $0x30] sm:$0xf]
      %v433 = vld [vmem:[%s410 + $0x34] sm:$0xf]
      %v434 = vld [vmem:[%s410 + $0x38] sm:$0xf]
      %v435 = vld [vmem:[%s410 + $0x3c] sm:$0xf]
      %v436 = vld [vmem:[%s2] sm:$0xf]
      %v437 = vld [vmem:[%s2 + $0x4] sm:$0xf]
      %v438 = vld [vmem:[%s3] sm:$0x1]
      %v440 = vlaneseq
      %v441 = vshrl.u32 %v440, 7
      %v442 = vsub.s32 0, %v441
      %v443 = vrot.slane %v438, %v442
      %v461 = vunpack.c.l.b16 %v420
      %v462 = vunpack.c.l.b16 %v421
      %v463 = vunpack.c.l.b16 %v422
      %v464 = vunpack.c.l.b16 %v423
      %v465 = vunpack.c.l.b16 %v424
      %v466 = vunpack.c.l.b16 %v425
      %v467 = vunpack.c.l.b16 %v426
      %v468 = vunpack.c.l.b16 %v427
      %v469 = vunpack.c.l.b16 %v428
      %v470 = vunpack.c.l.b16 %v429
      %v471 = vunpack.c.l.b16 %v430
      %v472 = vunpack.c.l.b16 %v431
      %v473 = vunpack.c.l.b16 %v432
      %v474 = vunpack.c.l.b16 %v433
      %v475 = vunpack.c.l.b16 %v434
      %v476 = vunpack.c.l.b16 %v435
      %v477 = vpack.c.b16 %v462, %v461
      %v478 = vpack.c.b16 %v464, %v463
      %v479 = vpack.c.b16 %v466, %v465
      %v480 = vpack.c.b16 %v468, %v467
      %v481 = vpack.c.b16 %v470, %v469
      %v482 = vpack.c.b16 %v472, %v471
      %v483 = vpack.c.b16 %v474, %v473
      %v484 = vpack.c.b16 %v476, %v475
      %v487 = vunpack.c.l.b16 %v436
      %v488 = vunpack.c.l.b16 %v437
      %v489 = vpack.c.b16 %v488, %v487
      %vm491 = vcmask 130048
      %v493 = vsel %vm491, %v477, 0
      %v496 = vsel %vm491, %v478, 0
      %v499 = vsel %vm491, %v479, 0
      %v502 = vsel %vm491, %v480, 0
      %v505 = vsel %vm491, %v481, 0
      %v508 = vsel %vm491, %v482, 0
      %v511 = vsel %vm491, %v483, 0
      %v514 = vsel %vm491, %v484, 0
      %516 = vmatprep.subr.bf16.mxu0 0
      %517 = vmatpush1.bf16.msra.mxu0 %v489
      %518 = vmatprep.subr.bf16.mxu0 0
      %519 = vmatpush1.bf16.msra.mxu0 0
      %520 = vmatprep.subr.bf16.mxu0 0
      %521 = vmatpush1.bf16.msra.mxu0 0
      %522 = vmatprep.subr.bf16.mxu0 0
      %523 = vmatpush1.bf16.msra.mxu0 0
      %524 = vmatprep.subr.bf16.mxu0 0
      %525 = vmatpush1.bf16.msra.mxu0 0
      %526 = vmatprep.subr.bf16.mxu0 0
      %527 = vmatpush1.bf16.msra.mxu0 0
      %528 = vmatprep.subr.bf16.mxu0 0
      %529 = vmatpush1.bf16.msra.mxu0 0
      %530 = vmatprep.subr.bf16.mxu0 0
      %531 = vmatpush1.bf16.msra.mxu0 0
      %532 = vmatprep.subr.bf16.mxu0 0
      %533 = vmatpush1.bf16.msra.mxu0 0
      %534 = vmatprep.subr.bf16.mxu0 0
      %535 = vmatpush1.bf16.msra.mxu0 0
      %536 = vmatprep.subr.bf16.mxu0 0
      %537 = vmatpush1.bf16.msra.mxu0 0
      %538 = vmatprep.subr.bf16.mxu0 0
      %539 = vmatpush1.bf16.msra.mxu0 0
      %540 = vmatprep.subr.bf16.mxu0 0
      %541 = vmatpush1.bf16.msra.mxu0 0
      %542 = vmatprep.subr.bf16.mxu0 0
      %543 = vmatpush1.bf16.msra.mxu0 0
      %544 = vmatprep.subr.bf16.mxu0 0
      %545 = vmatpush1.bf16.msra.mxu0 0
      %546 = vmatprep.subr.bf16.mxu0 0
      %547 = vmatpush1.bf16.msra.mxu0 0
      %548 = vmatprep.mubr.bf16.mxu0 0
      %549 = vmatmul.mubr.bf16.gmra.mrb[0].mxu0 %v493
      %v550 = vpop.f32.mrb[0].mxu0
      %v551 = vadd.f32 %v443, %v550
      %v552 = vpop.f32.mrb[0].mxu0
      %v553 = vpop.f32.mrb[0].mxu0
      %v554 = vadd.f32 %v443, %v553
      %v555 = vpop.f32.mrb[0].mxu0
      %556 = vmatprep.mubr.bf16.mxu0 0
      %557 = vmatmul.mubr.bf16.gmra.mrb[0].mxu0 %v496
      %v558 = vpop.f32.mrb[0].mxu0
      %v559 = vadd.f32 %v443, %v558
      %v560 = vpop.f32.mrb[0].mxu0
      %v561 = vpop.f32.mrb[0].mxu0
      %v562 = vadd.f32 %v443, %v561
      %v563 = vpop.f32.mrb[0].mxu0
      %564 = vmatprep.mubr.bf16.mxu0 0
      %565 = vmatmul.mubr.bf16.gmra.mrb[0].mxu0 %v499
      %v566 = vpop.f32.mrb[0].mxu0
      %v567 = vadd.f32 %v443, %v566
      %v568 = vpop.f32.mrb[0].mxu0
      %v569 = vpop.f32.mrb[0].mxu0
      %v570 = vadd.f32 %v443, %v569
      %v571 = vpop.f32.mrb[0].mxu0
      %572 = vmatprep.mubr.bf16.mxu0 0
      %573 = vmatmul.mubr.bf16.gmra.mrb[0].mxu0 %v502
      %v574 = vpop.f32.mrb[0].mxu0
      %v575 = vadd.f32 %v443, %v574
      %v576 = vpop.f32.mrb[0].mxu0
      %v577 = vpop.f32.mrb[0].mxu0
      %v578 = vadd.f32 %v443, %v577
      %v579 = vpop.f32.mrb[0].mxu0
      %580 = vmatprep.mubr.bf16.mxu0 0
      %581 = vmatmul.mubr.bf16.gmra.mrb[0].mxu0 %v505
      %v582 = vpop.f32.mrb[0].mxu0
      %v583 = vadd.f32 %v443, %v582
      %v584 = vpop.f32.mrb[0].mxu0
      %v585 = vpop.f32.mrb[0].mxu0
      %v586 = vadd.f32 %v443, %v585
      %v587 = vpop.f32.mrb[0].mxu0
      %588 = vmatprep.mubr.bf16.mxu0 0
      %589 = vmatmul.mubr.bf16.gmra.mrb[0].mxu0 %v508
      %v590 = vpop.f32.mrb[0].mxu0
      %v591 = vadd.f32 %v443, %v590
      %v592 = vpop.f32.mrb[0].mxu0
      %v593 = vpop.f32.mrb[0].mxu0
      %v594 = vadd.f32 %v443, %v593
      %v595 = vpop.f32.mrb[0].mxu0
      %596 = vmatprep.mubr.bf16.mxu0 0
      %597 = vmatmul.mubr.bf16.gmra.mrb[0].mxu0 %v511
      %v598 = vpop.f32.mrb[0].mxu0
      %v599 = vadd.f32 %v443, %v598
      %v600 = vpop.f32.mrb[0].mxu0
      %v601 = vpop.f32.mrb[0].mxu0
      %v602 = vadd.f32 %v443, %v601
      %v603 = vpop.f32.mrb[0].mxu0
      %604 = vmatprep.mubr.bf16.mxu0 0
      %605 = vmatmul.mubr.bf16.gmra.mrb[0].mxu0 %v514
      %v606 = vpop.f32.mrb[0].mxu0
      %v607 = vadd.f32 %v443, %v606
      %v608 = vpop.f32.mrb[0].mxu0
      %v609 = vpop.f32.mrb[0].mxu0
      %v610 = vadd.f32 %v443, %v609
      %v611 = vpop.f32.mrb[0].mxu0
      %612 = vdwg.mxu0
      %v613 = vpack.c.bf16 %v554, %v551
      %v614 = vpack.c.bf16 %v562, %v559
      %v615 = vpack.c.bf16 %v570, %v567
      %v616 = vpack.c.bf16 %v578, %v575
      %v617 = vpack.c.bf16 %v586, %v583
      %v618 = vpack.c.bf16 %v594, %v591
      %v619 = vpack.c.bf16 %v602, %v599
      %v620 = vpack.c.bf16 %v610, %v607
      %v621 = vld [vmem:[%s8] sm:$0xf]
      %v622 = vld [vmem:[%s8 + $0x4] sm:$0xf]
      %v623 = vld [vmem:[%s8 + $0x8] sm:$0xf]
      %v624 = vld [vmem:[%s8 + $0xc] sm:$0xf]
      %v625 = vld [vmem:[%s9] sm:$0x1]
      %v627 = vlaneseq
      %v628 = vshrl.u32 %v627, 7
      %v629 = vsub.s32 0, %v628
      %v630 = vrot.slane %v625, %v629
      %v636 = vunpack.c.l.b16 %v621
      %v637 = vunpack.c.l.b16 %v622
      %v638 = vunpack.c.l.b16 %v623
      %v639 = vunpack.c.l.b16 %v624
      %v640 = vpack.c.b16 %v637, %v636
      %v641 = vpack.c.b16 %v639, %v638
      %vm644 = vcmask 261120
      %v646 = vsel %vm644, %v613, 0
      %v649 = vsel %vm644, %v614, 0
      %v652 = vsel %vm644, %v615, 0
      %v655 = vsel %vm644, %v616, 0
      %v658 = vsel %vm644, %v617, 0
      %v661 = vsel %vm644, %v618, 0
      %v664 = vsel %vm644, %v619, 0
      %v667 = vsel %vm644, %v620, 0
      %669 = vmatprep.subr.bf16.mxu0 0
      %670 = vmatpush1.bf16.msra.mxu0 %v640
      %671 = vmatprep.subr.bf16.mxu0 0
      %672 = vmatpush1.bf16.msra.mxu0 %v641
      %673 = vmatprep.subr.bf16.mxu0 0
      %674 = vmatpush1.bf16.msra.mxu0 0
      %675 = vmatprep.subr.bf16.mxu0 0
      %676 = vmatpush1.bf16.msra.mxu0 0
      %677 = vmatprep.subr.bf16.mxu0 0
      %678 = vmatpush1.bf16.msra.mxu0 0
      %679 = vmatprep.subr.bf16.mxu0 0
      %680 = vmatpush1.bf16.msra.mxu0 0
      %681 = vmatprep.subr.bf16.mxu0 0
      %682 = vmatpush1.bf16.msra.mxu0 0
      %683 = vmatprep.subr.bf16.mxu0 0
      %684 = vmatpush1.bf16.msra.mxu0 0
      %685 = vmatprep.subr.bf16.mxu0 0
      %686 = vmatpush1.bf16.msra.mxu0 0
      %687 = vmatprep.subr.bf16.mxu0 0
      %688 = vmatpush1.bf16.msra.mxu0 0
      %689 = vmatprep.subr.bf16.mxu0 0
      %690 = vmatpush1.bf16.msra.mxu0 0
      %691 = vmatprep.subr.bf16.mxu0 0
      %692 = vmatpush1.bf16.msra.mxu0 0
      %693 = vmatprep.subr.bf16.mxu0 0
      %694 = vmatpush1.bf16.msra.mxu0 0
      %695 = vmatprep.subr.bf16.mxu0 0
      %696 = vmatpush1.bf16.msra.mxu0 0
      %697 = vmatprep.subr.bf16.mxu0 0
      %698 = vmatpush1.bf16.msra.mxu0 0
      %699 = vmatprep.subr.bf16.mxu0 0
      %700 = vmatpush1.bf16.msra.mxu0 0
      %701 = vmatprep.mubr.bf16.mxu0 0
      %702 = vmatmul.mubr.bf16.gmra.mrb[0].mxu0 %v646
      %v703 = vpop.f32.mrb[0].mxu0
      %v704 = vadd.f32 %v630, %v703
      %v705 = vpop.f32.mrb[0].mxu0
      %v706 = vpop.f32.mrb[0].mxu0
      %v707 = vadd.f32 %v630, %v706
      %v708 = vpop.f32.mrb[0].mxu0
      %709 = vmatprep.mubr.bf16.mxu0 0
      %710 = vmatmul.mubr.bf16.gmra.mrb[0].mxu0 %v649
      %v711 = vpop.f32.mrb[0].mxu0
      %v712 = vadd.f32 %v630, %v711
      %v713 = vpop.f32.mrb[0].mxu0
      %v714 = vpop.f32.mrb[0].mxu0
      %v715 = vadd.f32 %v630, %v714
      %v716 = vpop.f32.mrb[0].mxu0
      %717 = vmatprep.mubr.bf16.mxu0 0
      %718 = vmatmul.mubr.bf16.gmra.mrb[0].mxu0 %v652
      %v719 = vpop.f32.mrb[0].mxu0
      %v720 = vadd.f32 %v630, %v719
      %v721 = vpop.f32.mrb[0].mxu0
      %v722 = vpop.f32.mrb[0].mxu0
      %v723 = vadd.f32 %v630, %v722
      %v724 = vpop.f32.mrb[0].mxu0
      %725 = vmatprep.mubr.bf16.mxu0 0
      %726 = vmatmul.mubr.bf16.gmra.mrb[0].mxu0 %v655
      %v727 = vpop.f32.mrb[0].mxu0
      %v728 = vadd.f32 %v630, %v727
      %v729 = vpop.f32.mrb[0].mxu0
      %v730 = vpop.f32.mrb[0].mxu0
      %v731 = vadd.f32 %v630, %v730
      %v732 = vpop.f32.mrb[0].mxu0
      %733 = vmatprep.mubr.bf16.mxu0 0
      %734 = vmatmul.mubr.bf16.gmra.mrb[0].mxu0 %v658
      %v735 = vpop.f32.mrb[0].mxu0
      %v736 = vadd.f32 %v630, %v735
      %v737 = vpop.f32.mrb[0].mxu0
      %v738 = vpop.f32.mrb[0].mxu0
      %v739 = vadd.f32 %v630, %v738
      %v740 = vpop.f32.mrb[0].mxu0
      %741 = vmatprep.mubr.bf16.mxu0 0
      %742 = vmatmul.mubr.bf16.gmra.mrb[0].mxu0 %v661
      %v743 = vpop.f32.mrb[0].mxu0
      %v744 = vadd.f32 %v630, %v743
      %v745 = vpop.f32.mrb[0].mxu0
      %v746 = vpop.f32.mrb[0].mxu0
      %v747 = vadd.f32 %v630, %v746
      %v748 = vpop.f32.mrb[0].mxu0
      %749 = vmatprep.mubr.bf16.mxu0 0
      %750 = vmatmul.mubr.bf16.gmra.mrb[0].mxu0 %v664
      %v751 = vpop.f32.mrb[0].mxu0
      %v752 = vadd.f32 %v630, %v751
      %v753 = vpop.f32.mrb[0].mxu0
      %v754 = vpop.f32.mrb[0].mxu0
      %v755 = vadd.f32 %v630, %v754
      %v756 = vpop.f32.mrb[0].mxu0
      %757 = vmatprep.mubr.bf16.mxu0 0
      %758 = vmatmul.mubr.bf16.gmra.mrb[0].mxu0 %v667
      %v759 = vpop.f32.mrb[0].mxu0
      %v760 = vadd.f32 %v630, %v759
      %v761 = vpop.f32.mrb[0].mxu0
      %v762 = vpop.f32.mrb[0].mxu0
      %v763 = vadd.f32 %v630, %v762
      %v764 = vpop.f32.mrb[0].mxu0
      %765 = vdwg.mxu0
      %v766 = vmax.f32 %v704, 0.0
      %v767 = vmax.f32 %v707, 0.0
      %v768 = vmax.f32 %v712, 0.0
      %v769 = vmax.f32 %v715, 0.0
      %v770 = vmax.f32 %v720, 0.0
      %v771 = vmax.f32 %v723, 0.0
      %v772 = vmax.f32 %v728, 0.0
      %v773 = vmax.f32 %v731, 0.0
      %v774 = vmax.f32 %v736, 0.0
      %v775 = vmax.f32 %v739, 0.0
      %v776 = vmax.f32 %v744, 0.0
      %v777 = vmax.f32 %v747, 0.0
      %v778 = vmax.f32 %v752, 0.0
      %v779 = vmax.f32 %v755, 0.0
      %v780 = vmax.f32 %v760, 0.0
      %v781 = vmax.f32 %v763, 0.0
      %v782 = vpack.c.bf16 %v767, %v766
      %v783 = vpack.c.bf16 %v769, %v768
      %v784 = vpack.c.bf16 %v771, %v770
      %v785 = vpack.c.bf16 %v773, %v772
      %v786 = vpack.c.bf16 %v775, %v774
      %v787 = vpack.c.bf16 %v777, %v776
      %v788 = vpack.c.bf16 %v779, %v778
      %v789 = vpack.c.bf16 %v781, %v780
      %v790 = vld [vmem:[%s10] sm:$0xf]
      %v791 = vld [vmem:[%s10 + $0x4] sm:$0xf]
      %v792 = vld [vmem:[%s10 + $0x8] sm:$0xf]
      %v793 = vld [vmem:[%s10 + $0xc] sm:$0xf]
      %v794 = vld [vmem:[%s11] sm:$0x1]
      %v796 = vlaneseq
      %v797 = vshrl.u32 %v796, 7
      %v798 = vsub.s32 0, %v797
      %v799 = vrot.slane %v794, %v798
      %v805 = vunpack.c.l.b16 %v790
      %v806 = vunpack.c.l.b16 %v791
      %v807 = vunpack.c.l.b16 %v792
      %v808 = vunpack.c.l.b16 %v793
      %v809 = vpack.c.b16 %v806, %v805
      %v810 = vpack.c.b16 %v808, %v807
      %v814 = vsel %vm644, %v782, 0
      %v817 = vsel %vm644, %v783, 0
      %v820 = vsel %vm644, %v784, 0
      %v823 = vsel %vm644, %v785, 0
      %v826 = vsel %vm644, %v786, 0
      %v829 = vsel %vm644, %v787, 0
      %v832 = vsel %vm644, %v788, 0
      %v835 = vsel %vm644, %v789, 0
      %837 = vmatprep.subr.bf16.mxu0 0
      %838 = vmatpush1.bf16.msra.mxu0 %v809
      %839 = vmatprep.subr.bf16.mxu0 0
      %840 = vmatpush1.bf16.msra.mxu0 %v810
      %841 = vmatprep.subr.bf16.mxu0 0
      %842 = vmatpush1.bf16.msra.mxu0 0
      %843 = vmatprep.subr.bf16.mxu0 0
      %844 = vmatpush1.bf16.msra.mxu0 0
      %845 = vmatprep.subr.bf16.mxu0 0
      %846 = vmatpush1.bf16.msra.mxu0 0
      %847 = vmatprep.subr.bf16.mxu0 0
      %848 = vmatpush1.bf16.msra.mxu0 0
      %849 = vmatprep.subr.bf16.mxu0 0
      %850 = vmatpush1.bf16.msra.mxu0 0
      %851 = vmatprep.subr.bf16.mxu0 0
      %852 = vmatpush1.bf16.msra.mxu0 0
      %853 = vmatprep.subr.bf16.mxu0 0
      %854 = vmatpush1.bf16.msra.mxu0 0
      %855 = vmatprep.subr.bf16.mxu0 0
      %856 = vmatpush1.bf16.msra.mxu0 0
      %857 = vmatprep.subr.bf16.mxu0 0
      %858 = vmatpush1.bf16.msra.mxu0 0
      %859 = vmatprep.subr.bf16.mxu0 0
      %860 = vmatpush1.bf16.msra.mxu0 0
      %861 = vmatprep.subr.bf16.mxu0 0
      %862 = vmatpush1.bf16.msra.mxu0 0
      %863 = vmatprep.subr.bf16.mxu0 0
      %864 = vmatpush1.bf16.msra.mxu0 0
      %865 = vmatprep.subr.bf16.mxu0 0
      %866 = vmatpush1.bf16.msra.mxu0 0
      %867 = vmatprep.subr.bf16.mxu0 0
      %868 = vmatpush1.bf16.msra.mxu0 0
      %869 = vmatprep.mubr.bf16.mxu0 0
      %870 = vmatmul.mubr.bf16.gmra.mrb[0].mxu0 %v814
      %v871 = vpop.f32.mrb[0].mxu0
      %v872 = vadd.f32 %v799, %v871
      %v873 = vpop.f32.mrb[0].mxu0
      %v874 = vpop.f32.mrb[0].mxu0
      %v875 = vadd.f32 %v799, %v874
      %v876 = vpop.f32.mrb[0].mxu0
      %877 = vmatprep.mubr.bf16.mxu0 0
      %878 = vmatmul.mubr.bf16.gmra.mrb[0].mxu0 %v817
      %v879 = vpop.f32.mrb[0].mxu0
      %v880 = vadd.f32 %v799, %v879
      %v881 = vpop.f32.mrb[0].mxu0
      %v882 = vpop.f32.mrb[0].mxu0
      %v883 = vadd.f32 %v799, %v882
      %v884 = vpop.f32.mrb[0].mxu0
      %885 = vmatprep.mubr.bf16.mxu0 0
      %886 = vmatmul.mubr.bf16.gmra.mrb[0].mxu0 %v820
      %v887 = vpop.f32.mrb[0].mxu0
      %v888 = vadd.f32 %v799, %v887
      %v889 = vpop.f32.mrb[0].mxu0
      %v890 = vpop.f32.mrb[0].mxu0
      %v891 = vadd.f32 %v799, %v890
      %v892 = vpop.f32.mrb[0].mxu0
      %893 = vmatprep.mubr.bf16.mxu0 0
      %894 = vmatmul.mubr.bf16.gmra.mrb[0].mxu0 %v823
      %v895 = vpop.f32.mrb[0].mxu0
      %v896 = vadd.f32 %v799, %v895
      %v897 = vpop.f32.mrb[0].mxu0
      %v898 = vpop.f32.mrb[0].mxu0
      %v899 = vadd.f32 %v799, %v898
      %v900 = vpop.f32.mrb[0].mxu0
      %901 = vmatprep.mubr.bf16.mxu0 0
      %902 = vmatmul.mubr.bf16.gmra.mrb[0].mxu0 %v826
      %v903 = vpop.f32.mrb[0].mxu0
      %v904 = vadd.f32 %v799, %v903
      %v905 = vpop.f32.mrb[0].mxu0
      %v906 = vpop.f32.mrb[0].mxu0
      %v907 = vadd.f32 %v799, %v906
      %v908 = vpop.f32.mrb[0].mxu0
      %909 = vmatprep.mubr.bf16.mxu0 0
      %910 = vmatmul.mubr.bf16.gmra.mrb[0].mxu0 %v829
      %v911 = vpop.f32.mrb[0].mxu0
      %v912 = vadd.f32 %v799, %v911
      %v913 = vpop.f32.mrb[0].mxu0
      %v914 = vpop.f32.mrb[0].mxu0
      %v915 = vadd.f32 %v799, %v914
      %v916 = vpop.f32.mrb[0].mxu0
      %917 = vmatprep.mubr.bf16.mxu0 0
      %918 = vmatmul.mubr.bf16.gmra.mrb[0].mxu0 %v832
      %v919 = vpop.f32.mrb[0].mxu0
      %v920 = vadd.f32 %v799, %v919
      %v921 = vpop.f32.mrb[0].mxu0
      %v922 = vpop.f32.mrb[0].mxu0
      %v923 = vadd.f32 %v799, %v922
      %v924 = vpop.f32.mrb[0].mxu0
      %925 = vmatprep.mubr.bf16.mxu0 0
      %926 = vmatmul.mubr.bf16.gmra.mrb[0].mxu0 %v835
      %v927 = vpop.f32.mrb[0].mxu0
      %v928 = vadd.f32 %v799, %v927
      %v929 = vpop.f32.mrb[0].mxu0
      %v930 = vpop.f32.mrb[0].mxu0
      %v931 = vadd.f32 %v799, %v930
      %v932 = vpop.f32.mrb[0].mxu0
      %933 = vdwg.mxu0
      %v934 = vmax.f32 %v551, 0.0
      %v935 = vmax.f32 %v554, 0.0
      %v936 = vmax.f32 %v559, 0.0
      %v937 = vmax.f32 %v562, 0.0
      %v938 = vmax.f32 %v567, 0.0
      %v939 = vmax.f32 %v570, 0.0
      %v940 = vmax.f32 %v575, 0.0
      %v941 = vmax.f32 %v578, 0.0
      %v942 = vmax.f32 %v583, 0.0
      %v943 = vmax.f32 %v586, 0.0
      %v944 = vmax.f32 %v591, 0.0
      %v945 = vmax.f32 %v594, 0.0
      %v946 = vmax.f32 %v599, 0.0
      %v947 = vmax.f32 %v602, 0.0
      %v948 = vmax.f32 %v607, 0.0
      %v949 = vmax.f32 %v610, 0.0
      %v950 = vpack.c.bf16 %v935, %v934
      %v951 = vpack.c.bf16 %v937, %v936
      %v952 = vpack.c.bf16 %v939, %v938
      %v953 = vpack.c.bf16 %v941, %v940
      %v954 = vpack.c.bf16 %v943, %v942
      %v955 = vpack.c.bf16 %v945, %v944
      %v956 = vpack.c.bf16 %v947, %v946
      %v957 = vpack.c.bf16 %v949, %v948
      %v958 = vld [vmem:[%s4] sm:$0xf]
      %v959 = vld [vmem:[%s4 + $0x4] sm:$0xf]
      %v960 = vld [vmem:[%s4 + $0x8] sm:$0xf]
      %v961 = vld [vmem:[%s4 + $0xc] sm:$0xf]
      %v962 = vld [vmem:[%s5] sm:$0x1]
      %v964 = vlaneseq
      %v965 = vshrl.u32 %v964, 7
      %v966 = vsub.s32 0, %v965
      %v967 = vrot.slane %v962, %v966
      %v973 = vunpack.c.l.b16 %v958
      %v974 = vunpack.c.l.b16 %v959
      %v975 = vunpack.c.l.b16 %v960
      %v976 = vunpack.c.l.b16 %v961
      %v977 = vpack.c.b16 %v974, %v973
      %v978 = vpack.c.b16 %v976, %v975
      %v982 = vsel %vm644, %v950, 0
      %v985 = vsel %vm644, %v951, 0
      %v988 = vsel %vm644, %v952, 0
      %v991 = vsel %vm644, %v953, 0
      %v994 = vsel %vm644, %v954, 0
      %v997 = vsel %vm644, %v955, 0
      %v1000 = vsel %vm644, %v956, 0
      %v1003 = vsel %vm644, %v957, 0
      %1005 = vmatprep.subr.bf16.mxu0 0
      %1006 = vmatpush1.bf16.msra.mxu0 %v977
      %1007 = vmatprep.subr.bf16.mxu0 0
      %1008 = vmatpush1.bf16.msra.mxu0 %v978
      %1009 = vmatprep.subr.bf16.mxu0 0
      %1010 = vmatpush1.bf16.msra.mxu0 0
      %1011 = vmatprep.subr.bf16.mxu0 0
      %1012 = vmatpush1.bf16.msra.mxu0 0
      %1013 = vmatprep.subr.bf16.mxu0 0
      %1014 = vmatpush1.bf16.msra.mxu0 0
      %1015 = vmatprep.subr.bf16.mxu0 0
      %1016 = vmatpush1.bf16.msra.mxu0 0
      %1017 = vmatprep.subr.bf16.mxu0 0
      %1018 = vmatpush1.bf16.msra.mxu0 0
      %1019 = vmatprep.subr.bf16.mxu0 0
      %1020 = vmatpush1.bf16.msra.mxu0 0
      %1021 = vmatprep.subr.bf16.mxu0 0
      %1022 = vmatpush1.bf16.msra.mxu0 0
      %1023 = vmatprep.subr.bf16.mxu0 0
      %1024 = vmatpush1.bf16.msra.mxu0 0
      %1025 = vmatprep.subr.bf16.mxu0 0
      %1026 = vmatpush1.bf16.msra.mxu0 0
      %1027 = vmatprep.subr.bf16.mxu0 0
      %1028 = vmatpush1.bf16.msra.mxu0 0
      %1029 = vmatprep.subr.bf16.mxu0 0
      %1030 = vmatpush1.bf16.msra.mxu0 0
      %1031 = vmatprep.subr.bf16.mxu0 0
      %1032 = vmatpush1.bf16.msra.mxu0 0
      %1033 = vmatprep.subr.bf16.mxu0 0
      %1034 = vmatpush1.bf16.msra.mxu0 0
      %1035 = vmatprep.subr.bf16.mxu0 0
      %1036 = vmatpush1.bf16.msra.mxu0 0
      %1037 = vmatprep.mubr.bf16.mxu0 0
      %1038 = vmatmul.mubr.bf16.gmra.mrb[0].mxu0 %v982
      %v1039 = vpop.f32.mrb[0].mxu0
      %v1040 = vadd.f32 %v967, %v1039
      %v1041 = vpop.f32.mrb[0].mxu0
      %v1042 = vpop.f32.mrb[0].mxu0
      %v1043 = vadd.f32 %v967, %v1042
      %v1044 = vpop.f32.mrb[0].mxu0
      %1045 = vmatprep.mubr.bf16.mxu0 0
      %1046 = vmatmul.mubr.bf16.gmra.mrb[0].mxu0 %v985
      %v1047 = vpop.f32.mrb[0].mxu0
      %v1048 = vadd.f32 %v967, %v1047
      %v1049 = vpop.f32.mrb[0].mxu0
      %v1050 = vpop.f32.mrb[0].mxu0
      %v1051 = vadd.f32 %v967, %v1050
      %v1052 = vpop.f32.mrb[0].mxu0
      %1053 = vmatprep.mubr.bf16.mxu0 0
      %1054 = vmatmul.mubr.bf16.gmra.mrb[0].mxu0 %v988
      %v1055 = vpop.f32.mrb[0].mxu0
      %v1056 = vadd.f32 %v967, %v1055
      %v1057 = vpop.f32.mrb[0].mxu0
      %v1058 = vpop.f32.mrb[0].mxu0
      %v1059 = vadd.f32 %v967, %v1058
      %v1060 = vpop.f32.mrb[0].mxu0
      %1061 = vmatprep.mubr.bf16.mxu0 0
      %1062 = vmatmul.mubr.bf16.gmra.mrb[0].mxu0 %v991
      %v1063 = vpop.f32.mrb[0].mxu0
      %v1064 = vadd.f32 %v967, %v1063
      %v1065 = vpop.f32.mrb[0].mxu0
      %v1066 = vpop.f32.mrb[0].mxu0
      %v1067 = vadd.f32 %v967, %v1066
      %v1068 = vpop.f32.mrb[0].mxu0
      %1069 = vmatprep.mubr.bf16.mxu0 0
      %1070 = vmatmul.mubr.bf16.gmra.mrb[0].mxu0 %v994
      %v1071 = vpop.f32.mrb[0].mxu0
      %v1072 = vadd.f32 %v967, %v1071
      %v1073 = vpop.f32.mrb[0].mxu0
      %v1074 = vpop.f32.mrb[0].mxu0
      %v1075 = vadd.f32 %v967, %v1074
      %v1076 = vpop.f32.mrb[0].mxu0
      %1077 = vmatprep.mubr.bf16.mxu0 0
      %1078 = vmatmul.mubr.bf16.gmra.mrb[0].mxu0 %v997
      %v1079 = vpop.f32.mrb[0].mxu0
      %v1080 = vadd.f32 %v967, %v1079
      %v1081 = vpop.f32.mrb[0].mxu0
      %v1082 = vpop.f32.mrb[0].mxu0
      %v1083 = vadd.f32 %v967, %v1082
      %v1084 = vpop.f32.mrb[0].mxu0
      %1085 = vmatprep.mubr.bf16.mxu0 0
      %1086 = vmatmul.mubr.bf16.gmra.mrb[0].mxu0 %v1000
      %v1087 = vpop.f32.mrb[0].mxu0
      %v1088 = vadd.f32 %v967, %v1087
      %v1089 = vpop.f32.mrb[0].mxu0
      %v1090 = vpop.f32.mrb[0].mxu0
      %v1091 = vadd.f32 %v967, %v1090
      %v1092 = vpop.f32.mrb[0].mxu0
      %1093 = vmatprep.mubr.bf16.mxu0 0
      %1094 = vmatmul.mubr.bf16.gmra.mrb[0].mxu0 %v1003
      %v1095 = vpop.f32.mrb[0].mxu0
      %v1096 = vadd.f32 %v967, %v1095
      %v1097 = vpop.f32.mrb[0].mxu0
      %v1098 = vpop.f32.mrb[0].mxu0
      %v1099 = vadd.f32 %v967, %v1098
      %v1100 = vpop.f32.mrb[0].mxu0
      %1101 = vdwg.mxu0
      %v1102 = vstv %s419
      %v1103 = vmul.f32 %v1102, %v872
      %v1104 = vmul.f32 %v1102, %v875
      %v1105 = vmul.f32 %v1102, %v880
      %v1106 = vmul.f32 %v1102, %v883
      %v1107 = vmul.f32 %v1102, %v888
      %v1108 = vmul.f32 %v1102, %v891
      %v1109 = vmul.f32 %v1102, %v896
      %v1110 = vmul.f32 %v1102, %v899
      %v1111 = vmul.f32 %v1102, %v904
      %v1112 = vmul.f32 %v1102, %v907
      %v1113 = vmul.f32 %v1102, %v912
      %v1114 = vmul.f32 %v1102, %v915
      %v1115 = vmul.f32 %v1102, %v920
      %v1116 = vmul.f32 %v1102, %v923
      %v1117 = vmul.f32 %v1102, %v928
      %v1118 = vmul.f32 %v1102, %v931
      %v1119 = vadd.f32 %v1040, %v1103
      %v1120 = vadd.f32 %v1043, %v1104
      %v1121 = vadd.f32 %v1048, %v1105
      %v1122 = vadd.f32 %v1051, %v1106
      %v1123 = vadd.f32 %v1056, %v1107
      %v1124 = vadd.f32 %v1059, %v1108
      %v1125 = vadd.f32 %v1064, %v1109
      %v1126 = vadd.f32 %v1067, %v1110
      %v1127 = vadd.f32 %v1072, %v1111
      %v1128 = vadd.f32 %v1075, %v1112
      %v1129 = vadd.f32 %v1080, %v1113
      %v1130 = vadd.f32 %v1083, %v1114
      %v1131 = vadd.f32 %v1088, %v1115
      %v1132 = vadd.f32 %v1091, %v1116
      %v1133 = vadd.f32 %v1096, %v1117
      %v1134 = vadd.f32 %v1099, %v1118
      %v1135 = vmax.f32 %v1119, 0.0
      %v1136 = vmax.f32 %v1120, 0.0
      %v1137 = vmax.f32 %v1121, 0.0
      %v1138 = vmax.f32 %v1122, 0.0
      %v1139 = vmax.f32 %v1123, 0.0
      %v1140 = vmax.f32 %v1124, 0.0
      %v1141 = vmax.f32 %v1125, 0.0
      %v1142 = vmax.f32 %v1126, 0.0
      %v1143 = vmax.f32 %v1127, 0.0
      %v1144 = vmax.f32 %v1128, 0.0
      %v1145 = vmax.f32 %v1129, 0.0
      %v1146 = vmax.f32 %v1130, 0.0
      %v1147 = vmax.f32 %v1131, 0.0
      %v1148 = vmax.f32 %v1132, 0.0
      %v1149 = vmax.f32 %v1133, 0.0
      %v1150 = vmax.f32 %v1134, 0.0
      %v1151 = vpack.c.bf16 %v1136, %v1135
      %v1152 = vpack.c.bf16 %v1138, %v1137
      %v1153 = vpack.c.bf16 %v1140, %v1139
      %v1154 = vpack.c.bf16 %v1142, %v1141
      %v1155 = vpack.c.bf16 %v1144, %v1143
      %v1156 = vpack.c.bf16 %v1146, %v1145
      %v1157 = vpack.c.bf16 %v1148, %v1147
      %v1158 = vpack.c.bf16 %v1150, %v1149
      %v1159 = vld [vmem:[%s6] sm:$0xf]
      %v1160 = vld [vmem:[%s6 + $0x4] sm:$0xf]
      %v1161 = vld [vmem:[%s6 + $0x8] sm:$0xf]
      %v1162 = vld [vmem:[%s6 + $0xc] sm:$0xf]
      %v1163 = vld [vmem:[%s7] sm:$0x1]
      %v1165 = vlaneseq
      %v1166 = vshrl.u32 %v1165, 7
      %v1167 = vsub.s32 0, %v1166
      %v1168 = vrot.slane %v1163, %v1167
      %v1174 = vunpack.c.l.b16 %v1159
      %v1175 = vunpack.c.l.b16 %v1160
      %v1176 = vunpack.c.l.b16 %v1161
      %v1177 = vunpack.c.l.b16 %v1162
      %v1178 = vpack.c.b16 %v1175, %v1174
      %v1179 = vpack.c.b16 %v1177, %v1176
      %v1183 = vsel %vm644, %v1151, 0
      %v1186 = vsel %vm644, %v1152, 0
      %v1189 = vsel %vm644, %v1153, 0
      %v1192 = vsel %vm644, %v1154, 0
      %v1195 = vsel %vm644, %v1155, 0
      %v1198 = vsel %vm644, %v1156, 0
      %v1201 = vsel %vm644, %v1157, 0
      %v1204 = vsel %vm644, %v1158, 0
      %1206 = vmatprep.subr.bf16.mxu0 0
      %1207 = vmatpush1.bf16.msra.mxu0 %v1178
      %1208 = vmatprep.subr.bf16.mxu0 0
      %1209 = vmatpush1.bf16.msra.mxu0 %v1179
      %1210 = vmatprep.subr.bf16.mxu0 0
      %1211 = vmatpush1.bf16.msra.mxu0 0
      %1212 = vmatprep.subr.bf16.mxu0 0
      %1213 = vmatpush1.bf16.msra.mxu0 0
      %1214 = vmatprep.subr.bf16.mxu0 0
      %1215 = vmatpush1.bf16.msra.mxu0 0
      %1216 = vmatprep.subr.bf16.mxu0 0
      %1217 = vmatpush1.bf16.msra.mxu0 0
      %1218 = vmatprep.subr.bf16.mxu0 0
      %1219 = vmatpush1.bf16.msra.mxu0 0
      %1220 = vmatprep.subr.bf16.mxu0 0
      %1221 = vmatpush1.bf16.msra.mxu0 0
      %1222 = vmatprep.subr.bf16.mxu0 0
      %1223 = vmatpush1.bf16.msra.mxu0 0
      %1224 = vmatprep.subr.bf16.mxu0 0
      %1225 = vmatpush1.bf16.msra.mxu0 0
      %1226 = vmatprep.subr.bf16.mxu0 0
      %1227 = vmatpush1.bf16.msra.mxu0 0
      %1228 = vmatprep.subr.bf16.mxu0 0
      %1229 = vmatpush1.bf16.msra.mxu0 0
      %1230 = vmatprep.subr.bf16.mxu0 0
      %1231 = vmatpush1.bf16.msra.mxu0 0
      %1232 = vmatprep.subr.bf16.mxu0 0
      %1233 = vmatpush1.bf16.msra.mxu0 0
      %1234 = vmatprep.subr.bf16.mxu0 0
      %1235 = vmatpush1.bf16.msra.mxu0 0
      %1236 = vmatprep.subr.bf16.mxu0 0
      %1237 = vmatpush1.bf16.msra.mxu0 0
      %1238 = vmatprep.mubr.bf16.mxu0 0
      %1239 = vmatmul.mubr.bf16.gmra.mrb[0].mxu0 %v1183
      %v1240 = vpop.f32.mrb[0].mxu0
      %v1241 = vadd.f32 %v1168, %v1240
      %v1242 = vpop.f32.mrb[0].mxu0
      %v1243 = vpop.f32.mrb[0].mxu0
      %v1244 = vadd.f32 %v1168, %v1243
      %v1245 = vpop.f32.mrb[0].mxu0
      %1246 = vmatprep.mubr.bf16.mxu0 0
      %1247 = vmatmul.mubr.bf16.gmra.mrb[0].mxu0 %v1186
      %v1248 = vpop.f32.mrb[0].mxu0
      %v1249 = vadd.f32 %v1168, %v1248
      %v1250 = vpop.f32.mrb[0].mxu0
      %v1251 = vpop.f32.mrb[0].mxu0
      %v1252 = vadd.f32 %v1168, %v1251
      %v1253 = vpop.f32.mrb[0].mxu0
      %1254 = vmatprep.mubr.bf16.mxu0 0
      %1255 = vmatmul.mubr.bf16.gmra.mrb[0].mxu0 %v1189
      %v1256 = vpop.f32.mrb[0].mxu0
      %v1257 = vadd.f32 %v1168, %v1256
      %v1258 = vpop.f32.mrb[0].mxu0
      %v1259 = vpop.f32.mrb[0].mxu0
      %v1260 = vadd.f32 %v1168, %v1259
      %v1261 = vpop.f32.mrb[0].mxu0
      %1262 = vmatprep.mubr.bf16.mxu0 0
      %1263 = vmatmul.mubr.bf16.gmra.mrb[0].mxu0 %v1192
      %v1264 = vpop.f32.mrb[0].mxu0
      %v1265 = vadd.f32 %v1168, %v1264
      %v1266 = vpop.f32.mrb[0].mxu0
      %v1267 = vpop.f32.mrb[0].mxu0
      %v1268 = vadd.f32 %v1168, %v1267
      %v1269 = vpop.f32.mrb[0].mxu0
      %1270 = vmatprep.mubr.bf16.mxu0 0
      %1271 = vmatmul.mubr.bf16.gmra.mrb[0].mxu0 %v1195
      %v1272 = vpop.f32.mrb[0].mxu0
      %v1273 = vadd.f32 %v1168, %v1272
      %v1274 = vpop.f32.mrb[0].mxu0
      %v1275 = vpop.f32.mrb[0].mxu0
      %v1276 = vadd.f32 %v1168, %v1275
      %v1277 = vpop.f32.mrb[0].mxu0
      %1278 = vmatprep.mubr.bf16.mxu0 0
      %1279 = vmatmul.mubr.bf16.gmra.mrb[0].mxu0 %v1198
      %v1280 = vpop.f32.mrb[0].mxu0
      %v1281 = vadd.f32 %v1168, %v1280
      %v1282 = vpop.f32.mrb[0].mxu0
      %v1283 = vpop.f32.mrb[0].mxu0
      %v1284 = vadd.f32 %v1168, %v1283
      %v1285 = vpop.f32.mrb[0].mxu0
      %1286 = vmatprep.mubr.bf16.mxu0 0
      %1287 = vmatmul.mubr.bf16.gmra.mrb[0].mxu0 %v1201
      %v1288 = vpop.f32.mrb[0].mxu0
      %v1289 = vadd.f32 %v1168, %v1288
      %v1290 = vpop.f32.mrb[0].mxu0
      %v1291 = vpop.f32.mrb[0].mxu0
      %v1292 = vadd.f32 %v1168, %v1291
      %v1293 = vpop.f32.mrb[0].mxu0
      %1294 = vmatprep.mubr.bf16.mxu0 0
      %1295 = vmatmul.mubr.bf16.gmra.mrb[0].mxu0 %v1204
      %v1296 = vpop.f32.mrb[0].mxu0
      %v1297 = vadd.f32 %v1168, %v1296
      %v1298 = vpop.f32.mrb[0].mxu0
      %v1299 = vpop.f32.mrb[0].mxu0
      %v1300 = vadd.f32 %v1168, %v1299
      %v1301 = vpop.f32.mrb[0].mxu0
      %1302 = vdwg.mxu0
      %1303 = vst [vmem:[%s416] sm:$0xff] %v1241
      %1304 = vst [vmem:[%s416 + $0x8] sm:$0xff] %v1244
      %1305 = vst [vmem:[%s416 + $0x10] sm:$0xff] %v1249
      %1306 = vst [vmem:[%s416 + $0x18] sm:$0xff] %v1252
      %1307 = vst [vmem:[%s416 + $0x20] sm:$0xff] %v1257
      %1308 = vst [vmem:[%s416 + $0x28] sm:$0xff] %v1260
      %1309 = vst [vmem:[%s416 + $0x30] sm:$0xff] %v1265
      %1310 = vst [vmem:[%s416 + $0x38] sm:$0xff] %v1268
      %1311 = vst [vmem:[%s416 + $0x40] sm:$0xff] %v1273
      %1312 = vst [vmem:[%s416 + $0x48] sm:$0xff] %v1276
      %1313 = vst [vmem:[%s416 + $0x50] sm:$0xff] %v1281
      %1314 = vst [vmem:[%s416 + $0x58] sm:$0xff] %v1284
      %1315 = vst [vmem:[%s416 + $0x60] sm:$0xff] %v1289
      %1316 = vst [vmem:[%s416 + $0x68] sm:$0xff] %v1292
      %1317 = vst [vmem:[%s416 + $0x70] sm:$0xff] %v1297
      %1318 = vst [vmem:[%s416 + $0x78] sm:$0xff] %v1300
      %s1319 = smul.u32 16, %s24
      %p1320 = scmp.lt.s32.totalorder %s1319, 31
      %s1321 = scalar_select %p1320, %s1319, 31
      %s1322 = smul.addr %s1321, 8
      %s1323 = scalar_lea.vmem %s12, %s1322
      // Predicated region
      $region69: #{combined_network.1} parent=67 // pred_check
        %p1324 = pneg %p299
      $region70: #{combined_network.1} parent=67 // pred_check_branch
        %1326 = sbr.rel (%p1324) target = $region72
      $region71: #{combined_network.1} parent=67 // pred_region
        %s1327 = smul.u32 16, %s24
      $region72: #{combined_network.1} parent=67 // pred_fallthru
        _
    $region68: #{combined_network.1} parent=5 // pred_fallthru
      _
    %p1328 = scmp.le.s32.totalorder 2, %s19
    // Predicated region
    $region73: #{combined_network.1} parent=5 // pred_check
      %p1329 = pneg %p1328
    $region74: #{combined_network.1} parent=5 // pred_check_branch
      %1331 = sbr.rel (%p1329) target = $region76
    $region75: #{combined_network.1} parent=5 // pred_region
      %s1332 = ssub.s32 %s19, 2
      // Predicated region
      $region77: #{combined_network.1} parent=75 // pred_check
        %p1333 = pneg %p305
      $region78: #{combined_network.1} parent=75 // pred_check_branch
        %1335 = sbr.rel (%p1333) target = $region80
      $region79: #{combined_network.1} parent=75 // pred_region
        %s1336 = smul.u32 16, %s25
        %p1337 = scmp.lt.s32.totalorder %s1336, 31
        %s1338 = scalar_select %p1337, %s1336, 31
        %s1339 = smul.addr %s1338, 8
        %s1340 = scalar_lea.vmem %s12, %s1339
      $region80: #{combined_network.1} parent=75 // pred_fallthru
        _
    $region76: #{combined_network.1} parent=5 // pred_fallthru
      _
  $region6: #{combined_network.1} parent=0 // loop_footer
    %s23 = sadd.s32 1, %s19
  $region7: #{combined_network.1} parent=0 // loop_footer_branch
    %18 = sbr.rel target = $region3
  $region8: #{combined_network.1} parent=0 // loop_exit
    _

</llo_original>
